<compile_context>
chip_gen: v6e
topology: v6e:2x2x1
jax: 0.10.0
libtpu: 0.0.40
codegen_flags: <defaults>
</compile_context>

<pallas_src>
import functools
import math

import jax
import jax.numpy as jnp
from jax.experimental import pallas as pl
from jax.experimental.pallas import tpu as pltpu


_LANE = 128
_MAX_LANE_WIDTH = 8192              # widest lane-dense last dim we reshape to
_TARGET_BLOCK_BYTES = 2 << 20       # ~2 MiB / buffer (sane on v5e/v6e/v7x)
_VMEM_LIMIT_BYTES = 32 * 1024 * 1024


def _droppath_kernel_scalar(mask_ref, x_ref, o_ref, *, inv_keep_prob):
    """One sample per grid step; per-sample keep mask read from SMEM."""
    b = pl.program_id(0)
    keep = mask_ref[b]

    @pl.when(keep == 0)
    def _():
        # Dropped sample: x_ref may hold a stale (DMA-elided) block; never read it.
        o_ref[...] = jnp.zeros_like(o_ref)

    @pl.when(keep != 0)
    def _():
        o_ref[...] = (x_ref[...].astype(jnp.float32) * inv_keep_prob).astype(o_ref.dtype)


def _droppath_kernel_batched(scale_ref, x_ref, o_ref):
    """Several small samples per grid step; f32 scales as a (tile_b,1,1) block."""
    o_ref[...] = (x_ref[...] * scale_ref[...]).astype(o_ref.dtype)


def _choose_layout(per_sample, itemsize, batch, target_block_bytes):
    """Pick the (B, R, W) view of the activation and block sizes.

    Returns (R, W, tile_b, tile_r, tile_w).
    """
    subl = max(8, 32 // itemsize)                 # native sublane multiple per dtype
    aligned = per_sample % _LANE == 0

    if aligned:
        # Widest multiple of 128 (capped) that divides the per-sample length.
        w = _LANE
        for k in range(min(_MAX_LANE_WIDTH, per_sample) // _LANE, 0, -1):
            if per_sample % (k * _LANE) == 0:
                w = k * _LANE
                break
        rows, width = per_sample // w, w
    else:
        rows, width = 1, per_sample               # ragged: tail via edge-block masking

    sample_bytes = per_sample * itemsize

    # Batch tile for small samples; capped at ceil(B/2) so the batch grid axis
    # always has >= 2 blocks and both v7x TensorCores get work.
    cap = max(1, -(-batch // 2)) if batch > 1 else 1
    tile_b = max(1, min(batch, cap, max(1, target_block_bytes // max(1, sample_bytes))))

    if tile_b > 1:
        # Whole sample per block, several samples per grid step.
        return rows, width, tile_b, rows, width

    if aligned:
        tile_w = width
        tr = max(1, target_block_bytes // (width * itemsize))
        tile_r = rows if tr >= rows else max(subl, (tr // subl) * subl)
        if batch == 1 and tile_r == rows and rows >= 2 * subl:
            # Keep >= 2 grid blocks even for B == 1 so two cores can share rows.
            tile_r = max(subl, (((rows + 1) // 2) // subl) * subl)
    else:
        tile_r = 1
        if sample_bytes <= target_block_bytes:
            tile_w = width                        # whole ragged width; masked tail store
        else:
            tile_w = max(_LANE, (target_block_bytes // itemsize // _LANE) * _LANE)
    return rows, width, tile_b, tile_r, tile_w


def drop_path(x, drop_prob, key, training=True, *,
              target_block_bytes=_TARGET_BLOCK_BYTES):
    """Pallas implementation of DropPath.forward (stochastic depth)."""
    if drop_prob == 0.0 or not training:
        return x
    if not (0.0 < drop_prob < 1.0):
        raise ValueError(f"drop_prob must be in [0, 1), got {drop_prob}")

    keep_prob = 1.0 - drop_prob
    B = x.shape[0]
    per_sample = int(math.prod(x.shape[1:]))
    itemsize = jnp.dtype(x.dtype).itemsize

    R, W, tile_b, tile_r, tile_w = _choose_layout(per_sample, itemsize, B,
                                                  target_block_bytes)
    xv = x.reshape(B, R, W)                       # metadata-only: R * W == per_sample

    # Per-sample mask / scale: B scalars of glue math, kept in f32 throughout.
    rand = jax.random.uniform(key, (B,), dtype=jnp.float32)
    mask_f = jnp.floor(keep_prob + rand)          # exactly 0.0 or 1.0 (PyTorch semantics)
    scale_f = mask_f * (1.0 / keep_prob)
    mask_i = mask_f.astype(jnp.int32)

    if tile_b > 1:
        # Small-sample path: batch several samples per step, scales as a VMEM block.
        out = pl.pallas_call(
            _droppath_kernel_batched,
            out_shape=jax.ShapeDtypeStruct((B, R, W), x.dtype),
            grid=(pl.cdiv(B, tile_b),),
            in_specs=[
                pl.BlockSpec((tile_b, 1, 1), lambda i: (i, 0, 0)),
                pl.BlockSpec((tile_b, R, W), lambda i: (i, 0, 0)),
            ],
            out_specs=pl.BlockSpec((tile_b, R, W), lambda i: (i, 0, 0)),
            compiler_params=pltpu.CompilerParams(
                dimension_semantics=("parallel",),
                vmem_limit_bytes=_VMEM_LIMIT_BYTES),
        )(scale_f.reshape(B, 1, 1), xv)
    else:
        # One sample per step: SMEM-prefetched mask + dropped-sample DMA skip.
        grid = (B, pl.cdiv(R, tile_r), pl.cdiv(W, tile_w))

        def x_index_map(bi, ri, wi, mask_ref):
            keep = mask_ref[bi]
            # Dropped sample -> all its blocks alias (bi, 0, 0); Pallas elides the
            # repeated input DMA (the kernel never reads x_ref for those blocks).
            return (bi, ri * keep, wi * keep)

        def o_index_map(bi, ri, wi, mask_ref):
            return (bi, ri, wi)

        kernel = functools.partial(_droppath_kernel_scalar,
                                   inv_keep_prob=1.0 / keep_prob)
        out = pl.pallas_call(
            kernel,
            out_shape=jax.ShapeDtypeStruct((B, R, W), x.dtype),
            grid_spec=pltpu.PrefetchScalarGridSpec(
                num_scalar_prefetch=1,
                grid=grid,
                in_specs=[pl.BlockSpec((1, tile_r, tile_w), x_index_map)],
                out_specs=pl.BlockSpec((1, tile_r, tile_w), o_index_map),
            ),
            compiler_params=pltpu.CompilerParams(
                dimension_semantics=("parallel", "arbitrary", "arbitrary"),
                vmem_limit_bytes=_VMEM_LIMIT_BYTES),
        )(mask_i, xv)

    return out.reshape(x.shape)


def _reference(x, drop_prob, key):
    keep_prob = 1.0 - drop_prob
    rand = jax.random.uniform(key, (x.shape[0],), dtype=jnp.float32)
    mask = jnp.floor(keep_prob + rand)
    bshape = (x.shape[0],) + (1,) * (x.ndim - 1)
    scale = (mask * (1.0 / keep_prob)).reshape(bshape)
    return (x.astype(jnp.float32) * scale).astype(x.dtype)


if __name__ == "__main__":
    key = jax.random.PRNGKey(0)
    keys = jax.random.split(key, 10)

    # 1) Main NCHW case (aligned per-sample size, one sample per step).
    x = jax.random.normal(keys[0], (2, 4, 16, 16), dtype=jnp.float32)
    y = jax.block_until_ready(drop_path(x, 0.5, keys[1], training=True))
    assert y.shape == x.shape and y.dtype == x.dtype
    assert jnp.allclose(y, _reference(x, 0.5, keys[1]), atol=1e-6, rtol=1e-6)

    # 2) Ragged per-sample size (105 elems) -> no pad/slice HBM pass, masked tail.
    x2 = jax.random.normal(keys[2], (2, 3, 5, 7), dtype=jnp.float32)
    y2 = jax.block_until_ready(drop_path(x2, 0.3, keys[3], training=True))
    assert jnp.allclose(y2, _reference(x2, 0.3, keys[3]), atol=1e-6, rtol=1e-6)

    # 3) Larger aligned case -> wide (8192-lane) blocks.
    x3 = jax.random.normal(keys[4], (2, 16, 128, 160), dtype=jnp.float32)
    y3 = jax.block_until_ready(drop_path(x3, 0.5, keys[5], training=True))
    assert jnp.allclose(y3, _reference(x3, 0.5, keys[5]), atol=1e-6, rtol=1e-6)

    # 3b) Same data, small block budget -> multiple row blocks per sample,
    #     exercising the dropped-sample DMA-skip index_map.
    y3b = jax.block_until_ready(
        drop_path(x3, 0.5, keys[5], training=True, target_block_bytes=256 * 1024))
    assert jnp.allclose(y3b, _reference(x3, 0.5, keys[5]), atol=1e-6, rtol=1e-6)

    # 4) Batched-small path (tile_b > 1): several tiny samples per grid step.
    x4 = jax.random.normal(keys[6], (8, 4, 16, 16), dtype=jnp.float32)
    y4 = jax.block_until_ready(drop_path(x4, 0.5, keys[7], training=True))
    assert jnp.allclose(y4, _reference(x4, 0.5, keys[7]), atol=1e-6, rtol=1e-6)

    # 5) bf16 activations: dtype-aware sublane rounding, f32 scale math in-kernel.
    x5 = jax.random.normal(keys[8], (2, 16, 128, 160), dtype=jnp.bfloat16)
    y5 = jax.block_until_ready(drop_path(x5, 0.5, keys[9], training=True))
    assert y5.dtype == jnp.bfloat16
    assert jnp.allclose(y5.astype(jnp.float32),
                        _reference(x5, 0.5, keys[9]).astype(jnp.float32),
                        atol=1e-2, rtol=1e-2)

    # 6) Eval mode / drop_prob == 0 short-circuit returns x unchanged.
    assert jnp.array_equal(drop_path(x, 0.5, keys[1], training=False), x)
    assert jnp.array_equal(drop_path(x, 0.0, keys[1], training=True), x)

    print("KERNEL_OK")
</pallas_src>

<mosaic_0001>
module attributes {stable_mosaic.version = 11 : i64} {
  func.func @_droppath_kernel_scalar(%arg0: i32, %arg1: i32, %arg2: i32, %arg3: memref<2xi32, #tpu.memory_space<smem>>, %arg4: memref<1x1x1024xf32, #tpu.memory_space<vmem>>, %arg5: memref<1x1x1024xf32, #tpu.memory_space<vmem>>) attributes {dimension_semantics = [#tpu.dimension_semantics<parallel>, #tpu.dimension_semantics<arbitrary>, #tpu.dimension_semantics<arbitrary>], iteration_bounds = array<i64: 2, 1, 1>, scalar_prefetch = 1 : i64, scratch_operands = 0 : i64, tpu.core_type = #tpu.core_type<tc>, window_params = [{transform_indices = @transform_0, window_bounds = array<i64: 1, 1, 1024>}, {transform_indices = @transform_1, window_bounds = array<i64: 1, 1, 1024>}]} {
    %0 = arith.index_cast %arg0 : i32 to index
    %1 = memref.load %arg3[%0] : memref<2xi32, #tpu.memory_space<smem>>
    %c0_i32 = arith.constant 0 : i32
    %2 = arith.cmpi eq, %1, %c0_i32 : i32
    %3 = arith.extui %2 : i1 to i32
    %c0_i32_0 = arith.constant 0 : i32
    %4 = arith.cmpi ne, %3, %c0_i32_0 : i32
    scf.if %4 {
      %cst = arith.constant 0.000000e+00 : f32
      %8 = vector.broadcast %cst : f32 to vector<1x1x1024xf32>
      %c0 = arith.constant 0 : index
      %c0_3 = arith.constant 0 : index
      %c0_4 = arith.constant 0 : index
      %9 = vector.load %arg5[%c0, %c0_3, %c0_4] : memref<1x1x1024xf32, #tpu.memory_space<vmem>>, vector<1x1x1024xf32>
      tpu.vector_store %arg5[%c0, %c0_3, %c0_4], %8 {strides = array<i32>} : memref<1x1x1024xf32, #tpu.memory_space<vmem>>, vector<1x1x1024xf32>,
    } else {
    }
    %c0_i32_1 = arith.constant 0 : i32
    %5 = arith.cmpi ne, %1, %c0_i32_1 : i32
    %6 = arith.extui %5 : i1 to i32
    %c0_i32_2 = arith.constant 0 : i32
    %7 = arith.cmpi ne, %6, %c0_i32_2 : i32
    scf.if %7 {
      %c0 = arith.constant 0 : index
      %c0_3 = arith.constant 0 : index
      %c0_4 = arith.constant 0 : index
      %8 = vector.load %arg4[%c0, %c0_3, %c0_4] : memref<1x1x1024xf32, #tpu.memory_space<vmem>>, vector<1x1x1024xf32>
      %cst = arith.constant 2.000000e+00 : f32
      %9 = vector.broadcast %cst : f32 to vector<1x1x1024xf32>
      %10 = arith.mulf %8, %9 : vector<1x1x1024xf32>
      %c0_5 = arith.constant 0 : index
      %c0_6 = arith.constant 0 : index
      %c0_7 = arith.constant 0 : index
      %11 = vector.load %arg5[%c0_5, %c0_6, %c0_7] : memref<1x1x1024xf32, #tpu.memory_space<vmem>>, vector<1x1x1024xf32>
      tpu.vector_store %arg5[%c0_5, %c0_6, %c0_7], %10 {strides = array<i32>} : memref<1x1x1024xf32, #tpu.memory_space<vmem>>, vector<1x1x1024xf32>,
    } else {
    }
    return
  }
  func.func @transform_0(%arg0: i32, %arg1: i32, %arg2: i32, %arg3: memref<2xi32, #tpu.memory_space<smem>>) -> (i32, i32, i32) {
    %0 = arith.index_cast %arg0 : i32 to index
    %1 = memref.load %arg3[%0] : memref<2xi32, #tpu.memory_space<smem>>
    %2 = arith.muli %arg1, %1 : i32
    %3 = arith.muli %arg2, %1 : i32
    %c0_i32 = arith.constant 0 : i32
    return %arg0, %2, %3 : i32, i32, i32
  }
  func.func @transform_1(%arg0: i32, %arg1: i32, %arg2: i32, %arg3: memref<2xi32, #tpu.memory_space<smem>>) -> (i32, i32, i32) {
    %c0_i32 = arith.constant 0 : i32
    return %arg0, %arg1, %arg2 : i32, i32, i32
  }
}

</mosaic_0001>

<llo_original>
// kernel: tpu_custom_call.1
$region0: #{tpu_custom_call.1}
  #allocation0 [shape = 'u32[]', space=smem, size = 0x4, offset = 0x4, fixed_abs, tag = 'smem constant byte address 0x4 - core index']
  #allocation1 [shape = 'u32[144,128]{1,0:T(1,128)}', space=vmem, size = 0x12000, scoped, tag = 'internal scratch']
  #allocation2 [shape = 's32[1]{0}', space=sflag, size = 0x4, scoped, tag = 'scoped memory for tpu_custom_call.1']
  #allocation3 [shape = 'u8[512]{0}', space=smem, size = 0x200, scoped, tag = 'prefetched SMEM operand 0']
  %s0 = inlined_call_operand.hbm [shape: s32[2], index: 0, kind: input, shape index: {}]
  %s1 = inlined_call_operand.hbm [shape: f32[2,1,1024], index: 1, kind: input, shape index: {}]
  %s2 = inlined_call_operand.hbm [shape: f32[2,1,1024], index: 2, kind: output, shape index: {}]
  %s3 = sld [smem:[#allocation0]]
  $region49: #{tpu_custom_call.1} parent=0
    _
  %s5 = ssub.s32 1, %s3
  %s6 = scalar_select 0, %s5, %s3
  %8 = dma.hbm_to_smem %s0, 16, [#allocation3], [#allocation2]
  %9 = dma.done [#allocation2], 16
  %10 = sfence
  $region1: #{tpu_custom_call.1} parent=0
    #allocation4 [shape = 'u8[8192]{0}', space=vmem, size = 0x2000, scoped, tag = 'input window, operand 1']
    #allocation5 [shape = 's32[2]{0}', space=sflag, size = 0x8, scoped, tag = 'scoped memory for tpu_custom_call.1']
    #allocation6 [shape = 's32[2]{0}', space=sflag, size = 0x8, scoped, tag = 'scoped memory for tpu_custom_call.1']
    #allocation7 [shape = 'u8[8192]{0}', space=vmem, size = 0x2000, scoped, tag = 'output window, operand 0']
    %11 = vsyncpa [#allocation5], 0
    %s12 = scalar_lea.sflag [#allocation5], 1
    %13 = vsyncpa %s12, 0
    %14 = vsyncpa [#allocation6], 0
    %s15 = scalar_lea.sflag [#allocation6], 1
    %16 = vsyncpa %s15, 0
    loop: start=0, step=1, limit=4
    $region2: #{tpu_custom_call.1} parent=1 // loop_pre_header
      _
    $region3: #{tpu_custom_call.1} parent=1 // loop_header
      %s18 = sphi 0, %s22
      %p19 = scmp.ge.s32.totalorder %s18, 4
      %s25 = sphi 0, %s44
      %s26 = sphi 0, %s40
      %s27 = sphi 0, %s36
      %s28 = sphi 0, %s25
      %s29 = sphi 0, %s26
      %s30 = sphi 0, %s27
      %s31 = sphi 0, %s28
      %s32 = sphi 0, %s29
      %s33 = sphi 0, %s30
      %s57 = sphi 0, %s59
      %s60 = sphi 0, %s57
      %s61 = sphi 0, %s60
      %s77 = sphi 0, %s61
      %s87 = sphi 0, %s89
      %s90 = sphi 0, %s87
      %s91 = sphi 0, %s90
      %s107 = sphi 0, %s91
    $region4: #{tpu_custom_call.1} parent=1 // loop_header_branch
      %21 = sbr.rel (%p19) target = $region8
    $region5: #{tpu_custom_call.1} parent=1 // loop_body
      %s23 = ssub.s32 %s18, 1
      %s24 = ssub.s32 %s18, 2
      %s34 = sadd.s32 1, %s27
      %p35 = scmp.ge.s32.totalorder %s34, 1
      %s36 = scalar_select %p35, 0, %s34
      %s37 = sadd.s32 1, %s26
      %s38 = scalar_select %p35, %s37, %s26
      %p39 = scmp.ge.s32.totalorder %s38, 1
      %s40 = scalar_select %p39, 0, %s38
      %s41 = sadd.s32 1, %s25
      %s42 = scalar_select %p39, %s41, %s25
      %p43 = scmp.ge.s32.totalorder %s42, 2
      %s44 = scalar_select %p43, 0, %s42
      %s45 = sld [smem:[#allocation3 + %s25]]
      %s46 = smul.u32 %s26, %s45
      %s47 = smul.u32 %s27, %s45
      %s48 = sld [smem:[#allocation3 + %s44]]
      %s49 = smul.u32 %s40, %s48
      %s50 = smul.u32 %s36, %s48
      %s51 = ssub.s32 %s25, %s44
      %s52 = ssub.s32 %s46, %s49
      %s53 = sor.u32 %s51, %s52
      %s54 = ssub.s32 %s47, %s50
      %s55 = sor.u32 %s53, %s54
      %p56 = scmp.eq.s32.totalorder %s55, 0
      %s58 = sadd.s32 %s57, 1
      %s59 = scalar_select %p56, %s57, %s58
      %p62 = pneg %p56
      %p63 = scmp.eq.s32.totalorder %s18, 1
      %p64 = por %p62, %p63
      %p65 = scmp.ne.s32.totalorder %s57, %s60
      %p66 = scmp.eq.s32.totalorder %s18, 0
      %p67 = por %p65, %p66
      %p68 = scmp.ne.s32.totalorder %s57, %s60
      %p69 = scmp.eq.s32.totalorder %s23, 1
      %p70 = por %p68, %p69
      %p71 = scmp.ne.s32.totalorder %s60, %s61
      %p72 = scmp.eq.s32.totalorder %s23, 0
      %p73 = por %p71, %p72
      %p74 = scmp.ne.s32.totalorder %s60, %s61
      %p75 = scmp.eq.s32.totalorder %s24, 1
      %p76 = por %p74, %p75
      %p78 = scmp.ne.s32.totalorder %s61, %s77
      %p79 = scmp.eq.s32.totalorder %s24, 0
      %p80 = por %p78, %p79
      %s81 = ssub.s32 %s25, %s44
      %s82 = ssub.s32 %s26, %s40
      %s83 = sor.u32 %s81, %s82
      %s84 = ssub.s32 %s27, %s36
      %s85 = sor.u32 %s83, %s84
      %p86 = scmp.eq.s32.totalorder %s85, 0
      %s88 = sadd.s32 %s87, 1
      %s89 = scalar_select %p86, %s87, %s88
      %p92 = pneg %p86
      %p93 = scmp.eq.s32.totalorder %s18, 1
      %p94 = por %p92, %p93
      %p95 = scmp.ne.s32.totalorder %s87, %s90
      %p96 = scmp.eq.s32.totalorder %s18, 0
      %p97 = por %p95, %p96
      %p98 = scmp.ne.s32.totalorder %s87, %s90
      %p99 = scmp.eq.s32.totalorder %s23, 1
      %p100 = por %p98, %p99
      %p101 = scmp.ne.s32.totalorder %s90, %s91
      %p102 = scmp.eq.s32.totalorder %s23, 0
      %p103 = por %p101, %p102
      %p104 = scmp.ne.s32.totalorder %s90, %s91
      %p105 = scmp.eq.s32.totalorder %s24, 1
      %p106 = por %p104, %p105
      %p108 = scmp.ne.s32.totalorder %s91, %s107
      %p109 = scmp.eq.s32.totalorder %s24, 0
      %p110 = por %p108, %p109
      %p111 = scmp.le.s32.totalorder 1, %s18
      %p112 = scmp.lt.s32.totalorder %s18, 3
      %p113 = pnand %p111, %p112
      %p114 = pneg %p113
      // Predicated region
      $region9: #{tpu_custom_call.1} parent=5 // pred_check
        _
      $region10: #{tpu_custom_call.1} parent=5 // pred_check_branch
        %116 = sbr.rel (%p113) target = $region12
      $region11: #{tpu_custom_call.1} parent=5 // pred_region
        %s117 = ssub.s32 %s18, 1
      $region12: #{tpu_custom_call.1} parent=5 // pred_fallthru
        _
      %p118 = scmp.lt.s32.totalorder %s18, 2
      // Predicated region
      $region13: #{tpu_custom_call.1} parent=5 // pred_check
        %p119 = pneg %p118
      $region14: #{tpu_custom_call.1} parent=5 // pred_check_branch
        %121 = sbr.rel (%p119) target = $region16
      $region15: #{tpu_custom_call.1} parent=5 // pred_region
        // Predicated region
        $region17: #{tpu_custom_call.1} parent=15 // pred_check
          %p122 = pneg %p67
        $region18: #{tpu_custom_call.1} parent=15 // pred_check_branch
          %124 = sbr.rel (%p122) target = $region20
        $region19: #{tpu_custom_call.1} parent=15 // pred_region
          %s125 = sand.u32 %s57, 1
          %s126 = scalar_lea.sflag [#allocation5], %s125
          %s127 = sand.u32 %s57, 1
          %s128 = smul.addr %s127, 8
          %s129 = scalar_lea.vmem [#allocation4], %s128
          %s130 = sld [smem:[#allocation3 + %s25]]
          %s131 = smul.u32 %s26, %s130
          %s132 = smul.u32 %s27, %s130
          %s133 = smul.u32 8, %s132
          %s135 = ssub.s32 128, 128
          %136 = vsyncadd %s126, %s135
          %s137 = smul.addr %s131, 8
          %s138 = sadd.s32 %s133, %s137
          %s139 = smul.addr %s25, 8
          %s140 = sadd.s32 %s138, %s139
          %s141 = smul.addr %s140, 16
          %s142 = scalar_lea.hbm %s1, %s141
          %s144 = sshll.u32 %s129, 4
          %s145 = int_to_ptr.vmem [resolvable:$true] %s144
          %147 = dma.hbm_to_vmem [thread:$0]  %s142, 128, %s145, %s126
        $region20: #{tpu_custom_call.1} parent=15 // pred_fallthru
          _
      $region16: #{tpu_custom_call.1} parent=5 // pred_fallthru
        _
      %p148 = scmp.le.s32.totalorder 1, %s18
      %p149 = scmp.lt.s32.totalorder %s18, 3
      %p150 = pnand %p148, %p149
      %p151 = pneg %p150
      // Predicated region
      $region21: #{tpu_custom_call.1} parent=5 // pred_check
        _
      $region22: #{tpu_custom_call.1} parent=5 // pred_check_branch
        %153 = sbr.rel (%p150) target = $region24
      $region23: #{tpu_custom_call.1} parent=5 // pred_region
        %s154 = ssub.s32 %s18, 1
        %s155 = sand.u32 %s60, 1
        %s156 = scalar_lea.sflag [#allocation5], %s155
        %s157 = sand.u32 %s60, 1
        %s158 = smul.addr %s157, 8
        %s159 = scalar_lea.vmem [#allocation4], %s158
        // Predicated region
        $region25: #{tpu_custom_call.1} parent=23 // pred_check
          %p160 = pneg %p73
        $region26: #{tpu_custom_call.1} parent=23 // pred_check_branch
          %162 = sbr.rel (%p160) target = $region28
        $region27: #{tpu_custom_call.1} parent=23 // pred_region
          %163 = dma.done %s156, 128
        $region28: #{tpu_custom_call.1} parent=23 // pred_fallthru
          _
        %s164 = sand.u32 %s60, 1
        %s165 = scalar_lea.sflag [#allocation5], %s164
        %s166 = sand.u32 %s60, 1
        %s167 = smul.addr %s166, 8
        %s168 = scalar_lea.vmem [#allocation4], %s167
        %p169 = pneg %p73
        %p170 = pneg %p70
        %p171 = pneg %p103
        %p172 = pneg %p100
        %s173 = sand.u32 %s90, 1
        %s174 = scalar_lea.sflag [#allocation6], %s173
        %s175 = sand.u32 %s90, 1
        %s176 = smul.addr %s175, 8
        %s177 = scalar_lea.vmem [#allocation7], %s176
        %s178 = sld [smem:[#allocation3 + %s28]]
        %s179 = smul.u32 %s29, %s178
        %s180 = smul.u32 %s30, %s178
        %s181 = smul.u32 8, %s180
        %s182 = smul.u32 8, %s30
        %s183 = sld [smem:[#allocation3 + %s28]]
        %p184 = scmp.eq.s32.totalorder %s183, 0
        // Predicated region
        $region29: #{tpu_custom_call.1} parent=23 // pred_check
          %p185 = pneg %p184
        $region30: #{tpu_custom_call.1} parent=23 // pred_check_branch
          %187 = sbr.rel (%p185) target = $region32
        $region31: #{tpu_custom_call.1} parent=23 // pred_region
          %188 = vst [vmem:[%s177] sm:$0xff] 0.0
        $region32: #{tpu_custom_call.1} parent=23 // pred_fallthru
          _
        %p189 = scmp.ne.s32.totalorder %s183, 0
        // Predicated region
        $region33: #{tpu_custom_call.1} parent=23 // pred_check
          %p190 = pneg %p189
        $region34: #{tpu_custom_call.1} parent=23 // pred_check_branch
          %192 = sbr.rel (%p190) target = $region36
        $region35: #{tpu_custom_call.1} parent=23 // pred_region
          %v193 = vld [vmem:[%s159] sm:$0xff]
          %v194 = vmul.f32 %v193, 2.0
          %195 = vst [vmem:[%s177] sm:$0xff] %v194
        $region36: #{tpu_custom_call.1} parent=23 // pred_fallthru
          _
        %s196 = sand.u32 %s90, 1
        %s197 = scalar_lea.sflag [#allocation6], %s196
        %s198 = sand.u32 %s90, 1
        %s199 = smul.addr %s198, 8
        %s200 = scalar_lea.vmem [#allocation7], %s199
        // Predicated region
        $region37: #{tpu_custom_call.1} parent=23 // pred_check
          %p201 = pneg %p100
        $region38: #{tpu_custom_call.1} parent=23 // pred_check_branch
          %203 = sbr.rel (%p201) target = $region40
        $region39: #{tpu_custom_call.1} parent=23 // pred_region
          %s204 = smul.u32 8, %s30
          %s206 = ssub.s32 128, 128
          %207 = vsyncadd %s197, %s206
          %s208 = smul.addr %s29, 8
          %s209 = sadd.s32 %s204, %s208
          %s210 = smul.addr %s28, 8
          %s211 = sadd.s32 %s209, %s210
          %s212 = smul.addr %s211, 16
          %s213 = scalar_lea.hbm %s2, %s212
          %s215 = sshll.u32 %s200, 4
          %s216 = int_to_ptr.vmem [resolvable:$true] %s215
          %218 = dma.vmem_to_hbm [thread:$0]  %s216, 128, %s213, %s197
        $region40: #{tpu_custom_call.1} parent=23 // pred_fallthru
          _
      $region24: #{tpu_custom_call.1} parent=5 // pred_fallthru
        _
      %p219 = scmp.le.s32.totalorder 2, %s18
      // Predicated region
      $region41: #{tpu_custom_call.1} parent=5 // pred_check
        %p220 = pneg %p219
      $region42: #{tpu_custom_call.1} parent=5 // pred_check_branch
        %222 = sbr.rel (%p220) target = $region44
      $region43: #{tpu_custom_call.1} parent=5 // pred_region
        %s223 = ssub.s32 %s18, 2
        // Predicated region
        $region45: #{tpu_custom_call.1} parent=43 // pred_check
          %p224 = pneg %p106
        $region46: #{tpu_custom_call.1} parent=43 // pred_check_branch
          %226 = sbr.rel (%p224) target = $region48
        $region47: #{tpu_custom_call.1} parent=43 // pred_region
          %s227 = sand.u32 %s91, 1
          %s228 = scalar_lea.sflag [#allocation6], %s227
          %s229 = sand.u32 %s91, 1
          %s230 = smul.addr %s229, 8
          %s231 = scalar_lea.vmem [#allocation7], %s230
          %232 = dma.done %s228, 128
        $region48: #{tpu_custom_call.1} parent=43 // pred_fallthru
          _
      $region44: #{tpu_custom_call.1} parent=5 // pred_fallthru
        _
    $region6: #{tpu_custom_call.1} parent=1 // loop_footer
      %s22 = sadd.s32 1, %s18
    $region7: #{tpu_custom_call.1} parent=1 // loop_footer_branch
      %17 = sbr.rel target = $region3
    $region8: #{tpu_custom_call.1} parent=1 // loop_exit
      _
    %233 = vsyncpa [#allocation5], 1
    %s234 = scalar_lea.sflag [#allocation5], 1
    %235 = vsyncpa %s234, 1
    %236 = vsyncpa [#allocation6], 1
    %s237 = scalar_lea.sflag [#allocation6], 1
    %238 = vsyncpa %s237, 1

</llo_original>
